<compile_context>
chip_gen: v7x
topology: tpu7x:2x2x1
jax: 0.10.0
libtpu: 0.0.40
codegen_flags: <defaults>
</compile_context>

<pallas_src>
import functools

import jax
import jax.numpy as jnp
from jax.experimental import pallas as pl
from jax.experimental.pallas import tpu as pltpu

_LANE = 128
_SUBLANE = 8


def _round_up(x, m):
    return ((x + m - 1) // m) * m


def _dice_kernel(pred_ref, target_ref, out_ref, *, smooth, hw, row_tile,
                 need_mask):
    # Cast in-kernel so sub-f32 inputs stream from HBM at native width.
    p = pred_ref[...].astype(jnp.float32)      # (nc, rows, 128)
    t = target_ref[...].astype(jnp.float32)

    inter = jnp.sum(p * t, axis=0)             # (rows, 128)  dense tiles
    psum = jnp.sum(p, axis=0)
    tsum = jnp.sum(t, axis=0)

    numer = 2.0 * inter + smooth
    denom = psum + tsum + smooth
    # approx=True would move this to the EUP but costs ~1e-3 rel error, which
    # would break the 1e-5 self-test tolerance; keep the exact reciprocal.
    loss = 1.0 - numer * pl.reciprocal(denom, approx=False)

    if need_mask:
        # Zero the contribution of padded rows/lanes (tail grid block and/or
        # the 128-alignment pad).  Also guards smooth == 0 (0/0 in padding).
        rows = loss.shape[0]
        j = pl.program_id(0)
        row_ids = jax.lax.broadcasted_iota(jnp.int32, (rows, _LANE), 0)
        lane_ids = jax.lax.broadcasted_iota(jnp.int32, (rows, _LANE), 1)
        gidx = (j * row_tile + row_ids) * _LANE + lane_ids
        loss = jnp.where(gidx < hw, loss, 0.0)

    # Per-block partial: vreg-add tree + a single cross-sublane reduce ->
    # (1, 128) lane-dense store; negligible next to the streaming input DMA.
    out_ref[...] = jnp.sum(loss, axis=0, keepdims=True)


def dice_loss(pred, target, smooth=1.0):
    """Pallas TPU implementation of Diceloss.forward for NCHW inputs."""
    assert pred.shape == target.shape
    n, c, h, w = pred.shape
    nc = n * c
    hw = h * w

    pred2 = pred.reshape(nc, hw)
    target2 = target.reshape(nc, hw)

    # Reshape HW onto (rows, 128) lanes.  Pad to a 128-multiple only when
    # strictly necessary (common image sizes are already aligned); padded
    # elements are masked out inside the kernel, never padded to tile size.
    hw128 = _round_up(hw, _LANE)
    if hw128 != hw:
        # TODO(synk): avoid this HBM copy with a 2-D-layout tail path.
        pad = hw128 - hw
        pred2 = jnp.pad(pred2, ((0, 0), (0, pad)))
        target2 = jnp.pad(target2, ((0, 0), (0, pad)))
    n_rows = hw128 // _LANE
    pred3 = pred2.reshape(nc, n_rows, _LANE)
    target3 = target2.reshape(nc, n_rows, _LANE)

    # ---- Generation-aware VMEM budget (v5e/v6e: 128 MiB, v7x: 64 MiB). ----
    try:
        vmem_cap = int(pltpu.get_tpu_info().vmem_capacity_bytes)
    except Exception:  # conservative fallback (v7x-sized)
        vmem_cap = 64 * 1024 * 1024
    budget = min(vmem_cap * 5 // 8, 48 * 1024 * 1024)
    vmem_limit = int(min(vmem_cap * 3 // 4, budget + 16 * 1024 * 1024))

    itemsize = jnp.dtype(pred.dtype).itemsize
    per_row = (
        2 * 2 * nc * _LANE * itemsize   # 2 inputs x 2 pipeline buffers
        + 3 * nc * _LANE * 4            # in-kernel f32 copies: p, t, p*t
        + 6 * _LANE * 4                 # dense per-pixel intermediates
    )
    # TODO(synk): for very large N*C, add an "arbitrary" grid axis over NC
    # instead of letting a single 8-row block exceed the budget.
    max_rows = max(_SUBLANE, (budget // per_row) // _SUBLANE * _SUBLANE)

    if n_rows <= _SUBLANE:
        row_tile = n_rows                       # single full block
    else:
        # Aim for >= 2 blocks so both v7x TensorCores get work.
        half = _round_up((n_rows + 1) // 2, _SUBLANE)
        row_tile = max(_SUBLANE, min(max_rows, half))
    num_blocks = -(-n_rows // row_tile)
    need_mask = (num_blocks * row_tile * _LANE) != hw

    kernel = functools.partial(
        _dice_kernel, smooth=float(smooth), hw=hw, row_tile=row_tile,
        need_mask=need_mask)

    partials = pl.pallas_call(
        kernel,
        out_shape=jax.ShapeDtypeStruct((1, num_blocks * _LANE), jnp.float32),
        grid_spec=pltpu.PrefetchScalarGridSpec(
            num_scalar_prefetch=0,
            grid=(num_blocks,),
            in_specs=[
                pl.BlockSpec((nc, row_tile, _LANE), lambda j: (0, j, 0)),
                pl.BlockSpec((nc, row_tile, _LANE), lambda j: (0, j, 0)),
            ],
            out_specs=pl.BlockSpec((1, _LANE), lambda j: (0, j)),
        ),
        compiler_params=pltpu.CompilerParams(
            dimension_semantics=("parallel",),
            vmem_limit_bytes=vmem_limit,
        ),
    )(pred3, target3)

    return jnp.sum(partials) / jnp.float32(hw)


def dice_loss_ref(pred, target, smooth=1.0):
    pred = pred.astype(jnp.float32)
    target = target.astype(jnp.float32)
    inter = (pred * target).sum(axis=0).sum(axis=0)
    loss = 1.0 - (2.0 * inter + smooth) / (
        pred.sum(axis=0).sum(axis=0) + target.sum(axis=0).sum(axis=0) + smooth
    )
    return loss.mean()


if __name__ == "__main__":
    key = jax.random.PRNGKey(0)
    k1, k2 = jax.random.split(key)
    # Small NCHW shapes consistent with a segmentation-style dice loss.
    pred = jax.nn.sigmoid(jax.random.normal(k1, (2, 4, 16, 16), jnp.float32))
    target = (jax.random.uniform(k2, (2, 4, 16, 16)) > 0.5).astype(jnp.float32)

    out = dice_loss(pred, target, smooth=1.0)
    out = jax.block_until_ready(out)

    ref = dice_loss_ref(pred, target, smooth=1.0)
    assert jnp.allclose(out, ref, atol=1e-5, rtol=1e-5), (out, ref)
    print("KERNEL_OK")
</pallas_src>

<mosaic_0001>
module attributes {stable_mosaic.version = 11 : i64} {
  func.func @_dice_kernel(%arg0: i32, %arg1: memref<8x2x128xf32, #tpu.memory_space<vmem>>, %arg2: memref<8x2x128xf32, #tpu.memory_space<vmem>>, %arg3: memref<1x128xf32, #tpu.memory_space<vmem>>) attributes {dimension_semantics = [#tpu.dimension_semantics<parallel>], iteration_bounds = array<i64: 1>, scalar_prefetch = 0 : i64, scratch_operands = 0 : i64, tpu.core_type = #tpu.core_type<tc>, window_params = [{transform_indices = @transform_0, window_bounds = array<i64: 8, 2, 128>}, {transform_indices = @transform_1, window_bounds = array<i64: 8, 2, 128>}, {transform_indices = @transform_2, window_bounds = array<i64: 1, 128>}]} {
    %c0 = arith.constant 0 : index
    %c0_0 = arith.constant 0 : index
    %c0_1 = arith.constant 0 : index
    %0 = vector.load %arg1[%c0, %c0_0, %c0_1] : memref<8x2x128xf32, #tpu.memory_space<vmem>>, vector<8x2x128xf32>
    %c0_2 = arith.constant 0 : index
    %c0_3 = arith.constant 0 : index
    %c0_4 = arith.constant 0 : index
    %1 = vector.load %arg2[%c0_2, %c0_3, %c0_4] : memref<8x2x128xf32, #tpu.memory_space<vmem>>, vector<8x2x128xf32>
    %2 = arith.mulf %0, %1 : vector<8x2x128xf32>
    %cst = arith.constant dense<0.000000e+00> : vector<2x128xf32>
    %3 = vector.multi_reduction <add>, %2, %cst [0] : vector<8x2x128xf32> to vector<2x128xf32>
    %cst_5 = arith.constant dense<0.000000e+00> : vector<2x128xf32>
    %4 = vector.multi_reduction <add>, %0, %cst_5 [0] : vector<8x2x128xf32> to vector<2x128xf32>
    %cst_6 = arith.constant dense<0.000000e+00> : vector<2x128xf32>
    %5 = vector.multi_reduction <add>, %1, %cst_6 [0] : vector<8x2x128xf32> to vector<2x128xf32>
    %cst_7 = arith.constant 2.000000e+00 : f32
    %6 = vector.broadcast %cst_7 : f32 to vector<2x128xf32>
    %7 = arith.mulf %6, %3 : vector<2x128xf32>
    %cst_8 = arith.constant 1.000000e+00 : f32
    %8 = vector.broadcast %cst_8 : f32 to vector<2x128xf32>
    %9 = arith.addf %7, %8 : vector<2x128xf32>
    %10 = arith.addf %4, %5 : vector<2x128xf32>
    %cst_9 = arith.constant 1.000000e+00 : f32
    %11 = vector.broadcast %cst_9 : f32 to vector<2x128xf32>
    %12 = arith.addf %10, %11 : vector<2x128xf32>
    %13 = tpu.reciprocal %12 : vector<2x128xf32> -> vector<2x128xf32>
    %14 = arith.mulf %9, %13 : vector<2x128xf32>
    %cst_10 = arith.constant 1.000000e+00 : f32
    %15 = vector.broadcast %cst_10 : f32 to vector<2x128xf32>
    %16 = arith.subf %15, %14 : vector<2x128xf32>
    %cst_11 = arith.constant dense<0.000000e+00> : vector<128xf32>
    %17 = vector.multi_reduction <add>, %16, %cst_11 [0] : vector<2x128xf32> to vector<128xf32>
    %18 = vector.shape_cast %17 : vector<128xf32> to vector<1x128xf32>
    %c0_12 = arith.constant 0 : index
    %c0_13 = arith.constant 0 : index
    %19 = vector.load %arg3[%c0_12, %c0_13] : memref<1x128xf32, #tpu.memory_space<vmem>>, vector<1x128xf32>
    tpu.vector_store %arg3[%c0_12, %c0_13], %18 {strides = array<i32>} : memref<1x128xf32, #tpu.memory_space<vmem>>, vector<1x128xf32>,
    return
  }
  func.func @transform_0(%arg0: i32) -> (i32, i32, i32) {
    %c0_i32 = arith.constant 0 : i32
    %c0_i32_0 = arith.constant 0 : i32
    %c0_i32_1 = arith.constant 0 : i32
    return %c0_i32, %arg0, %c0_i32_0 : i32, i32, i32
  }
  func.func @transform_1(%arg0: i32) -> (i32, i32, i32) {
    %c0_i32 = arith.constant 0 : i32
    %c0_i32_0 = arith.constant 0 : i32
    %c0_i32_1 = arith.constant 0 : i32
    return %c0_i32, %arg0, %c0_i32_0 : i32, i32, i32
  }
  func.func @transform_2(%arg0: i32) -> (i32, i32) {
    %c0_i32 = arith.constant 0 : i32
    %c0_i32_0 = arith.constant 0 : i32
    return %c0_i32, %arg0 : i32, i32
  }
}

</mosaic_0001>

<llo_original>
// kernel: tpu_custom_call.1
$region0: #{tpu_custom_call.1}
  #allocation0 [shape = 'u32[]', space=smem, size = 0x4, offset = 0x4, fixed_abs, tag = 'smem constant byte address 0x4 - core index']
  #allocation1 [shape = 'u32[144,128]{1,0:T(1,128)}', space=vmem, size = 0x12000, scoped, tag = 'internal scratch']
  %s0 = inlined_call_operand.hbm [shape: f32[8,2,128], index: 0, kind: input, shape index: {}]
  %s1 = inlined_call_operand.hbm [shape: f32[8,2,128], index: 1, kind: input, shape index: {}]
  %s2 = inlined_call_operand.hbm [shape: f32[1,128], index: 2, kind: output, shape index: {}]
  %s3 = sld [smem:[#allocation0]]
  $region26: #{tpu_custom_call.1} parent=0
    _
  %s5 = ssub.s32 1, %s3
  %s6 = scalar_select 0, %s5, %s3
  $region1: #{tpu_custom_call.1} parent=0
    #allocation2 [shape = 'u8[8192]{0}', space=vmem, size = 0x2000, scoped, tag = 'input window, operand 0, single buffered']
    #allocation3 [shape = 's32[1]{0}', space=sflag, size = 0x4, scoped, tag = 'scoped memory for tpu_custom_call.1']
    #allocation4 [shape = 's32[1]{0}', space=sflag, size = 0x4, scoped, tag = 'scoped memory for tpu_custom_call.1']
    #allocation5 [shape = 'u8[8192]{0}', space=vmem, size = 0x2000, scoped, tag = 'input window, operand 1, single buffered']
    #allocation6 [shape = 's32[1]{0}', space=sflag, size = 0x4, scoped, tag = 'scoped memory for tpu_custom_call.1']
    #allocation7 [shape = 'u8[512]{0}', space=vmem, size = 0x400, scoped, tag = 'output window, operand 0, single buffered']
    %7 = vsyncpa [#allocation3], 0
    %8 = vsyncpa [#allocation6], 0
    %9 = vsyncpa [#allocation4], 0
    // Predicated region
    $region2: #{tpu_custom_call.1} parent=1 // pred_check
      _
    $region3: #{tpu_custom_call.1} parent=1 // pred_check_branch
      %11 = sbr.rel (0) target = $region5
    $region4: #{tpu_custom_call.1} parent=1 // pred_region
      %s13 = ssub.s32 256, 256
      %14 = vsyncadd [#allocation3], %s13
      %s15 = sshll.u32 [#allocation2], 4
      %s16 = int_to_ptr.vmem [resolvable:$true] %s15
      %21 = dma.hbm_to_vmem [thread:$0]  %s0, 256, %s16, [#allocation3], 32, 32, 2
    $region5: #{tpu_custom_call.1} parent=1 // pred_fallthru
      _
    // Predicated region
    $region6: #{tpu_custom_call.1} parent=1 // pred_check
      _
    $region7: #{tpu_custom_call.1} parent=1 // pred_check_branch
      %23 = sbr.rel (0) target = $region9
    $region8: #{tpu_custom_call.1} parent=1 // pred_region
      %s25 = ssub.s32 256, 256
      %26 = vsyncadd [#allocation6], %s25
      %s27 = sshll.u32 [#allocation5], 4
      %s28 = int_to_ptr.vmem [resolvable:$true] %s27
      %33 = dma.hbm_to_vmem [thread:$0]  %s1, 256, %s28, [#allocation6], 32, 32, 2
    $region9: #{tpu_custom_call.1} parent=1 // pred_fallthru
      _
    // Predicated region
    $region10: #{tpu_custom_call.1} parent=1 // pred_check
      _
    $region11: #{tpu_custom_call.1} parent=1 // pred_check_branch
      %35 = sbr.rel (0) target = $region13
    $region12: #{tpu_custom_call.1} parent=1 // pred_region
      %36 = dma.done [#allocation3], 256
    $region13: #{tpu_custom_call.1} parent=1 // pred_fallthru
      _
    // Predicated region
    $region14: #{tpu_custom_call.1} parent=1 // pred_check
      _
    $region15: #{tpu_custom_call.1} parent=1 // pred_check_branch
      %38 = sbr.rel (0) target = $region17
    $region16: #{tpu_custom_call.1} parent=1 // pred_region
      %39 = dma.done [#allocation6], 256
    $region17: #{tpu_custom_call.1} parent=1 // pred_fallthru
      _
    %v40 = vld [vmem:[#allocation2] sm:$0x3]
    %v41 = vld [vmem:[#allocation2 + $0x2] sm:$0x3]
    %v42 = vld [vmem:[#allocation2 + $0x4] sm:$0x3]
    %v43 = vld [vmem:[#allocation2 + $0x6] sm:$0x3]
    %v44 = vld [vmem:[#allocation2 + $0x8] sm:$0x3]
    %v45 = vld [vmem:[#allocation2 + $0xa] sm:$0x3]
    %v46 = vld [vmem:[#allocation2 + $0xc] sm:$0x3]
    %v47 = vld [vmem:[#allocation2 + $0xe] sm:$0x3]
    %v48 = vld [vmem:[#allocation5] sm:$0x3]
    %v49 = vld [vmem:[#allocation5 + $0x2] sm:$0x3]
    %v50 = vld [vmem:[#allocation5 + $0x4] sm:$0x3]
    %v51 = vld [vmem:[#allocation5 + $0x6] sm:$0x3]
    %v52 = vld [vmem:[#allocation5 + $0x8] sm:$0x3]
    %v53 = vld [vmem:[#allocation5 + $0xa] sm:$0x3]
    %v54 = vld [vmem:[#allocation5 + $0xc] sm:$0x3]
    %v55 = vld [vmem:[#allocation5 + $0xe] sm:$0x3]
    %v56 = vmul.f32 %v40, %v48
    %v57 = vmul.f32 %v41, %v49
    %v58 = vmul.f32 %v42, %v50
    %v59 = vmul.f32 %v43, %v51
    %v60 = vmul.f32 %v44, %v52
    %v61 = vmul.f32 %v45, %v53
    %v62 = vmul.f32 %v46, %v54
    %v63 = vmul.f32 %v47, %v55
    %vm64 = vcmask 1041408
    %v65 = vsel %vm64, %v56, 0.0
    %v66 = vsel %vm64, %v57, 0.0
    %v67 = vadd.f32 %v65, %v66
    %v68 = vsel %vm64, %v58, 0.0
    %v69 = vadd.f32 %v67, %v68
    %v70 = vsel %vm64, %v59, 0.0
    %v71 = vadd.f32 %v69, %v70
    %v72 = vsel %vm64, %v60, 0.0
    %v73 = vadd.f32 %v71, %v72
    %v74 = vsel %vm64, %v61, 0.0
    %v75 = vadd.f32 %v73, %v74
    %v76 = vsel %vm64, %v62, 0.0
    %v77 = vadd.f32 %v75, %v76
    %v78 = vsel %vm64, %v63, 0.0
    %v79 = vadd.f32 %v77, %v78
    %v80 = vsel %vm64, %v40, 0.0
    %v81 = vsel %vm64, %v41, 0.0
    %v82 = vadd.f32 %v80, %v81
    %v83 = vsel %vm64, %v42, 0.0
    %v84 = vadd.f32 %v82, %v83
    %v85 = vsel %vm64, %v43, 0.0
    %v86 = vadd.f32 %v84, %v85
    %v87 = vsel %vm64, %v44, 0.0
    %v88 = vadd.f32 %v86, %v87
    %v89 = vsel %vm64, %v45, 0.0
    %v90 = vadd.f32 %v88, %v89
    %v91 = vsel %vm64, %v46, 0.0
    %v92 = vadd.f32 %v90, %v91
    %v93 = vsel %vm64, %v47, 0.0
    %v94 = vadd.f32 %v92, %v93
    %v95 = vsel %vm64, %v48, 0.0
    %v96 = vsel %vm64, %v49, 0.0
    %v97 = vadd.f32 %v95, %v96
    %v98 = vsel %vm64, %v50, 0.0
    %v99 = vadd.f32 %v97, %v98
    %v100 = vsel %vm64, %v51, 0.0
    %v101 = vadd.f32 %v99, %v100
    %v102 = vsel %vm64, %v52, 0.0
    %v103 = vadd.f32 %v101, %v102
    %v104 = vsel %vm64, %v53, 0.0
    %v105 = vadd.f32 %v103, %v104
    %v106 = vsel %vm64, %v54, 0.0
    %v107 = vadd.f32 %v105, %v106
    %v108 = vsel %vm64, %v55, 0.0
    %v109 = vadd.f32 %v107, %v108
    %v110 = vmul.f32 %v79, 2.0
    %v111 = vadd.f32 %v110, 1.0
    %v112 = vadd.f32 %v94, %v109
    %v113 = vadd.f32 %v112, 1.0
    %v114 = vrcp.pop %v113
    %v115 = vmul.f32 %v111, %v114
    %v116 = vsub.f32 1.0, %v115
    %v117 = vsel %vm64, %v116, 0.0
    %v118 = vrot.slane %v117, 4
    %v119 = vadd.f32 %v117, %v118
    %v120 = vrot.slane %v119, 2
    %v121 = vadd.f32 %v119, %v120
    %v122 = vrot.slane %v121, 1
    %v123 = vadd.f32 %v121, %v122
    %124 = vst [vmem:[#allocation7] sm:$0x1] %v123
    // Predicated region
    $region18: #{tpu_custom_call.1} parent=1 // pred_check
      _
    $region19: #{tpu_custom_call.1} parent=1 // pred_check_branch
      %126 = sbr.rel (0) target = $region21
    $region20: #{tpu_custom_call.1} parent=1 // pred_region
      %s128 = ssub.s32 16, 16
      %129 = vsyncadd [#allocation4], %s128
      %s131 = sshll.u32 [#allocation7], 4
      %s132 = int_to_ptr.vmem [resolvable:$true] %s131
      %134 = dma.vmem_to_hbm [thread:$0]  %s132, 16, %s2, [#allocation4]
    $region21: #{tpu_custom_call.1} parent=1 // pred_fallthru
      _
    // Predicated region
    $region22: #{tpu_custom_call.1} parent=1 // pred_check
      _
    $region23: #{tpu_custom_call.1} parent=1 // pred_check_branch
      %136 = sbr.rel (0) target = $region25
    $region24: #{tpu_custom_call.1} parent=1 // pred_region
      %137 = dma.done [#allocation4], 16
    $region25: #{tpu_custom_call.1} parent=1 // pred_fallthru
      _
    %138 = vsyncpa [#allocation3], 1
    %139 = vsyncpa [#allocation6], 1
    %140 = vsyncpa [#allocation4], 1

</llo_original>
